<compile_context>
chip_gen: v5e
topology: v5e:2x2
jax: 0.10.0
libtpu: 0.0.40
codegen_flags: <defaults>
</compile_context>

<pallas_src>
import math

import jax
import jax.numpy as jnp
from jax.experimental import pallas as pl
from jax.experimental.pallas import tpu as pltpu

_LANES = 128          # TPU vreg lane width; last dim of the 2-D slab.
_MAX_TILE_ROWS = 1024 # (1024, 128) f32 block = 512 KiB -> ~2 MiB with in/out
                      # double buffering: safe on v5e/v6e/v7x scoped VMEM.


def _copy_kernel(x_ref, o_ref):
    # Elementwise pass-through on the current (tile_rows, 128) VMEM tile.
    o_ref[...] = x_ref[...]


def _lane_dense_copy(x2d):
    """Tiled identity copy of a lane-dense (rows, 128) slab."""
    rows, lanes = x2d.shape
    # Single full-extent block when small (always legal); otherwise fixed
    # 1024-row tiles (rows is pre-padded to a multiple of _MAX_TILE_ROWS).
    tile_rows = rows if rows <= _MAX_TILE_ROWS else _MAX_TILE_ROWS
    grid = rows // tile_rows
    nbytes = rows * lanes * x2d.dtype.itemsize

    return pl.pallas_call(
        _copy_kernel,
        out_shape=jax.ShapeDtypeStruct((rows, lanes), x2d.dtype),
        grid_spec=pltpu.PrefetchScalarGridSpec(
            num_scalar_prefetch=0,
            grid=(grid,),
            in_specs=[pl.BlockSpec((tile_rows, lanes), lambda r: (r, 0))],
            out_specs=pl.BlockSpec((tile_rows, lanes), lambda r: (r, 0)),
        ),
        compiler_params=pltpu.CompilerParams(
            dimension_semantics=("parallel",),
        ),
        # Pure memory traffic: read + write of the whole slab, zero flops.
        cost_estimate=pl.CostEstimate(
            flops=0, transcendentals=0, bytes_accessed=2 * nbytes
        ),
    )(x2d)


def base_sentence_encoder_forward(x):
    """Pallas implementation of BaseSentenceEncoder.forward.

    x: (batch, seq, embedding_dim) array.
    returns: tensor identical to x (forward is a no-op stub in the reference).

    NOTE: the cheapest correct implementation is simply `return x` (zero HBM
    traffic); this wrapper keeps the Pallas copy kernel but lays the data out
    lane-dense and tiles it so the copy runs at (near) HBM roofline.
    """
    orig_shape = x.shape
    total = math.prod(orig_shape)

    # Flatten to 1-D, pad to a multiple of 128 lanes.
    flat = x.reshape(total)
    pad_elems = (-total) % _LANES
    if pad_elems:
        flat = jnp.pad(flat, (0, pad_elems))
    rows = flat.shape[0] // _LANES
    x2d = flat.reshape(rows, _LANES)

    # Pad rows up to a multiple of the tile size so the grid divides evenly
    # (only needed when we actually tile, i.e. rows > _MAX_TILE_ROWS).
    if rows > _MAX_TILE_ROWS:
        pad_rows = (-rows) % _MAX_TILE_ROWS
        if pad_rows:
            x2d = jnp.pad(x2d, ((0, pad_rows), (0, 0)))

    out2d = _lane_dense_copy(x2d)

    out_flat = out2d.reshape(-1)[:total]
    return out_flat.reshape(orig_shape)


if __name__ == "__main__":
    # Small shapes consistent with a sentence encoder:
    # batch=2 sentences, seq=8 tokens, embedding_dim=32.
    embedding_dim = 32
    batch, seq = 2, 8

    key = jax.random.PRNGKey(0)
    x = jax.random.normal(key, (batch, seq, embedding_dim), dtype=jnp.float32)

    out = base_sentence_encoder_forward(x)
    jax.block_until_ready(out)
    assert out.shape == x.shape
    assert bool(jnp.allclose(out, x))

    # Exercise the lane-padding path (total not a multiple of 128).
    x_pad = jax.random.normal(jax.random.PRNGKey(0), (3, 7, 50), dtype=jnp.float32)
    out_pad = base_sentence_encoder_forward(x_pad)
    jax.block_until_ready(out_pad)
    assert out_pad.shape == x_pad.shape
    assert bool(jnp.allclose(out_pad, x_pad))

    # Exercise the multi-step tiled grid path (rows > _MAX_TILE_ROWS).
    x_big = jax.random.normal(jax.random.PRNGKey(0), (2, 512, 320), dtype=jnp.float32)
    out_big = base_sentence_encoder_forward(x_big)
    jax.block_until_ready(out_big)
    assert out_big.shape == x_big.shape
    assert bool(jnp.allclose(out_big, x_big))

    print("KERNEL_OK")
</pallas_src>

<mosaic_0001>
module attributes {stable_mosaic.version = 11 : i64} {
  func.func @_copy_kernel(%arg0: i32, %arg1: memref<4x128xf32, #tpu.memory_space<vmem>>, %arg2: memref<4x128xf32, #tpu.memory_space<vmem>>) attributes {dimension_semantics = [#tpu.dimension_semantics<parallel>], iteration_bounds = array<i64: 1>, scalar_prefetch = 0 : i64, scratch_operands = 0 : i64, tpu.core_type = #tpu.core_type<tc>, window_params = [{transform_indices = @transform_0, window_bounds = array<i64: 4, 128>}, {transform_indices = @transform_1, window_bounds = array<i64: 4, 128>}]} {
    %c0 = arith.constant 0 : index
    %c0_0 = arith.constant 0 : index
    %0 = vector.load %arg1[%c0, %c0_0] : memref<4x128xf32, #tpu.memory_space<vmem>>, vector<4x128xf32>
    %c0_1 = arith.constant 0 : index
    %c0_2 = arith.constant 0 : index
    %1 = vector.load %arg2[%c0_1, %c0_2] : memref<4x128xf32, #tpu.memory_space<vmem>>, vector<4x128xf32>
    tpu.vector_store %arg2[%c0_1, %c0_2], %0 {strides = array<i32>} : memref<4x128xf32, #tpu.memory_space<vmem>>, vector<4x128xf32>,
    return
  }
  func.func @transform_0(%arg0: i32) -> (i32, i32) {
    %c0_i32 = arith.constant 0 : i32
    %c0_i32_0 = arith.constant 0 : i32
    return %arg0, %c0_i32 : i32, i32
  }
  func.func @transform_1(%arg0: i32) -> (i32, i32) {
    %c0_i32 = arith.constant 0 : i32
    %c0_i32_0 = arith.constant 0 : i32
    return %arg0, %c0_i32 : i32, i32
  }
}

</mosaic_0001>

<llo_original>
// kernel: tpu_custom_call.1
$region0: #{tpu_custom_call.1}
  #allocation0 [shape = 'u32[]', space=smem, size = 0x4, offset = 0x4, fixed_abs, tag = 'smem constant byte address 0x4 - core index']
  #allocation1 [shape = 'u32[72,128]{1,0:T(1,128)}', space=vmem, size = 0x9000, scoped, tag = 'internal scratch']
  %s0 = inlined_call_operand.hbm [shape: f32[4,128], index: 0, kind: input, shape index: {}]
  %s1 = inlined_call_operand.hbm [shape: f32[4,128], index: 1, kind: output, shape index: {}]
  %s2 = sld [smem:[#allocation0]]
  $region18: #{tpu_custom_call.1} parent=0
    _
  %s4 = ssub.s32 1, %s2
  %s5 = scalar_select 0, %s4, %s2
  $region1: #{tpu_custom_call.1} parent=0
    #allocation2 [shape = 'u8[2048]{0}', space=vmem, size = 0x800, scoped, tag = 'input window, operand 0, single buffered']
    #allocation3 [shape = 's32[1]{0}', space=sflag, size = 0x4, scoped, tag = 'scoped memory for tpu_custom_call.1']
    #allocation4 [shape = 's32[1]{0}', space=sflag, size = 0x4, scoped, tag = 'scoped memory for tpu_custom_call.1']
    #allocation5 [shape = 'u8[2048]{0}', space=vmem, size = 0x800, scoped, tag = 'output window, operand 0, single buffered']
    %6 = vsyncpa [#allocation3], 0
    %7 = vsyncpa [#allocation4], 0
    // Predicated region
    $region2: #{tpu_custom_call.1} parent=1 // pred_check
      _
    $region3: #{tpu_custom_call.1} parent=1 // pred_check_branch
      %9 = sbr.rel (0) target = $region5
    $region4: #{tpu_custom_call.1} parent=1 // pred_region
      %11 = vsyncadd [#allocation3], 0
      %s13 = sshll.u32 %s0, 4
      %s14 = int_to_ptr.hbm [resolvable:$true] %s13
      %s15 = sshll.u32 [#allocation2], 4
      %s16 = int_to_ptr.vmem [resolvable:$true] %s15
      %18 = dma.hbm_to_vmem [thread:$0]  %s14, 64, %s16, [#allocation3]
    $region5: #{tpu_custom_call.1} parent=1 // pred_fallthru
      _
    // Predicated region
    $region6: #{tpu_custom_call.1} parent=1 // pred_check
      _
    $region7: #{tpu_custom_call.1} parent=1 // pred_check_branch
      %20 = sbr.rel (0) target = $region9
    $region8: #{tpu_custom_call.1} parent=1 // pred_region
      %22 = dma.done [#allocation3], 64
    $region9: #{tpu_custom_call.1} parent=1 // pred_fallthru
      _
    %v23 = vld [vmem:[#allocation2] sm:$0xf]
    %24 = vst [vmem:[#allocation5] sm:$0xf] %v23
    // Predicated region
    $region10: #{tpu_custom_call.1} parent=1 // pred_check
      _
    $region11: #{tpu_custom_call.1} parent=1 // pred_check_branch
      %26 = sbr.rel (0) target = $region13
    $region12: #{tpu_custom_call.1} parent=1 // pred_region
      %28 = vsyncadd [#allocation4], 0
      %s30 = sshll.u32 [#allocation5], 4
      %s31 = int_to_ptr.vmem [resolvable:$true] %s30
      %s32 = sshll.u32 %s1, 4
      %s33 = int_to_ptr.hbm [resolvable:$true] %s32
      %35 = dma.vmem_to_hbm [thread:$0]  %s31, 64, %s33, [#allocation4]
    $region13: #{tpu_custom_call.1} parent=1 // pred_fallthru
      _
    // Predicated region
    $region14: #{tpu_custom_call.1} parent=1 // pred_check
      _
    $region15: #{tpu_custom_call.1} parent=1 // pred_check_branch
      %37 = sbr.rel (0) target = $region17
    $region16: #{tpu_custom_call.1} parent=1 // pred_region
      %39 = dma.done [#allocation4], 64
    $region17: #{tpu_custom_call.1} parent=1 // pred_fallthru
      _
    %40 = vsyncpa [#allocation3], 1
    %41 = vsyncpa [#allocation4], 1

</llo_original>
